<compile_context>
chip_gen: v6e
topology: v6e:2x2x1
jax: 0.10.0
libtpu: 0.0.40
codegen_flags: <defaults>
</compile_context>

<pallas_src>
import functools

import jax
import jax.numpy as jnp
from jax.experimental import pallas as pl
from jax.experimental.pallas import tpu as pltpu


def _round_up(a, b):
    return ((a + b - 1) // b) * b


# ----------------------------- Pallas kernel -------------------------------
def _esm_mlp_kernel(x_ref, w1_ref, w2_ref, w3_ref, w4_ref, o_ref):
    """Fused per-pixel MLP, transposed layout (features x pixels).

    Biases are folded into the weights via an appended ones row, so the whole
    hidden stack is three MXU matmuls + fused ReLU/bf16 casts.

    x_ref : (K+1, TM)    bf16  K = V*N per-pixel features + trailing ones row
    w1    : (D1+1, K+1)  bf16  [[W1^T | b1], [0..0, 1]]  (block-diag shared branch)
    w2    : (Hd+1, D1+1) bf16  [[W2^T | b2], [0..0, 1]]
    w3    : (Fd+1, Hd+1) bf16  [[W3^T | b3], [0..0, 1]]
    w4    : (Fd+1, 1)    f32   [w4 ; b4]  (VPU multiply + sublane reduce)
    o_ref : (1, TM)      f32   lane-dense per-pixel disparity row
    """
    x = x_ref[...]                                                   # (K+1, TM)
    h = jnp.dot(w1_ref[...], x, preferred_element_type=jnp.float32)
    h = jnp.maximum(h, 0.0).astype(jnp.bfloat16)                     # fused ReLU+cast
    h = jnp.dot(w2_ref[...], h, preferred_element_type=jnp.float32)
    h = jnp.maximum(h, 0.0).astype(jnp.bfloat16)
    h = jnp.dot(w3_ref[...], h, preferred_element_type=jnp.float32)
    h = jnp.maximum(h, 0.0)                                          # (Fd+1, TM) f32
    # Final (Fd+1) -> 1 regression on VPU/XLU (sublane reduce); lane-dense out.
    out = jnp.sum(h * w4_ref[...], axis=0, keepdims=True)            # (1, TM)
    o_ref[...] = out.astype(o_ref.dtype)


def _pallas_mlp_t(feat_t, w1a, w2a, w3a, w4a, *, tile_m):
    """feat_t: (K+1, Mpad) bf16 -> (Mpad,) f32; Mpad divisible by tile_m."""
    K1, Mpad = feat_t.shape
    assert Mpad % tile_m == 0
    G = Mpad // tile_m
    D1a, Hda, Fda = w1a.shape[0], w2a.shape[0], w3a.shape[0]

    def full2d(a):
        # Whole-array block, constant index_map: tiny, VMEM-resident, DMA'd once.
        return pl.BlockSpec(a.shape, lambda i: (0, 0))

    flops = 2 * Mpad * (K1 * D1a + D1a * Hda + Hda * Fda + Fda)
    bytes_accessed = (Mpad * (K1 * 2 + 4)                       # bf16 in, f32 out
                      + 2 * (D1a * K1 + Hda * D1a + Fda * Hda)  # bf16 weights
                      + 4 * Fda)                                # f32 w4/b4

    out = pl.pallas_call(
        _esm_mlp_kernel,
        out_shape=jax.ShapeDtypeStruct((G, 1, tile_m), jnp.float32),
        grid=(G,),
        in_specs=[
            pl.BlockSpec((K1, tile_m), lambda i: (0, i)),
            full2d(w1a), full2d(w2a), full2d(w3a), full2d(w4a),
        ],
        out_specs=pl.BlockSpec((None, 1, tile_m), lambda i: (i, 0, 0)),
        compiler_params=pltpu.CompilerParams(
            dimension_semantics=("parallel",)),
        cost_estimate=pl.CostEstimate(
            flops=int(flops), transcendentals=0,
            bytes_accessed=int(bytes_accessed)),
    )(feat_t, w1a, w2a, w3a, w4a)
    return out.reshape(Mpad)


def _choose_tile(M, tile_m):
    """Pick (lane_tile, padded_M).

    Single tile whenever M fits tile_m (optimal on 1-TC v5e/v6e and for small
    problems); otherwise an EVEN number of equal tiles so v7x's 2 TensorCores
    get balanced work through the "parallel" grid axis.
    """
    if M <= tile_m:
        tm = _round_up(max(M, 128), 128)
        return tm, tm
    g = -(-M // tile_m)          # ceil div
    g += g % 2                   # even grid for 2-TC chips
    tm = _round_up(-(-M // g), 128)
    return tm, g * tm


# ------------------------------ Parameters ---------------------------------
def init_params(key, *, input_dim, branch_dim, hidden_dim, feats_dim, n_views):
    ks = jax.random.split(key, 8)
    N, Bd, Hd, Fd, V = input_dim, branch_dim, hidden_dim, feats_dim, n_views

    def lin(kw, fan_in, shape):
        return jax.random.normal(kw, shape, jnp.float32) / jnp.sqrt(fan_in)

    # Shared per-view branch weight, expanded to block-diagonal (V*N, V*Bd).
    wb = lin(ks[0], N, (N, Bd))
    w1 = jnp.kron(jnp.eye(V, dtype=jnp.float32), wb)          # (V*N, V*Bd)
    b1 = jnp.tile(lin(ks[1], N, (1, Bd)), (1, V)).reshape(1, V * Bd)

    w2 = lin(ks[2], V * Bd, (V * Bd, Hd))
    b2 = lin(ks[3], V * Bd, (1, Hd))
    w3 = lin(ks[4], Hd, (Hd, Fd))
    b3 = lin(ks[5], Hd, (1, Fd))
    w4 = lin(ks[6], Fd, (Fd, 1))
    b4 = lin(ks[7], Fd, (1, 1))
    return dict(w1=w1, b1=b1, w2=w2, b2=b2, w3=w3, b3=b3, w4=w4, b4=b4)


def _fold_params(params):
    """Transpose weights and fold biases in via a ones-propagation row."""
    def aug(w, b):
        w_t = w.T
        dout, din = w_t.shape
        top = jnp.concatenate([w_t, b.reshape(dout, 1)], axis=1)       # (dout, din+1)
        bot = jnp.concatenate([jnp.zeros((1, din), w_t.dtype),
                               jnp.ones((1, 1), w_t.dtype)], axis=1)   # (1, din+1)
        return jnp.concatenate([top, bot], axis=0)                     # (dout+1, din+1)

    w1a = aug(params["w1"], params["b1"]).astype(jnp.bfloat16)   # (D1+1, K+1)
    w2a = aug(params["w2"], params["b2"]).astype(jnp.bfloat16)   # (Hd+1, D1+1)
    w3a = aug(params["w3"], params["b3"]).astype(jnp.bfloat16)   # (Fd+1, Hd+1)
    w4a = jnp.concatenate([params["w4"], params["b4"].reshape(1, 1)],
                          axis=0).astype(jnp.float32)            # (Fd+1, 1)
    return w1a, w2a, w3a, w4a


# ------------------------------ Forward pass --------------------------------
@functools.partial(jax.jit, static_argnames=("tile_m",))
def esmnet_forward(params, x, *, tile_m=8192):
    """x: (B1, B2, N, H, W, V) -> disparity map (B1*B2, 1, H, W) (NCHW)."""
    B1, B2, N, H, W, V = x.shape
    B = B1 * B2
    M = B * H * W
    # ESMNet.forward: input.reshape(B1*B2, N, H, W, V) -> (B, N, H*W, V) (free).
    x = x.reshape(B, N, H * W, V)
    # One fused relayout + bf16 downcast: (B,N,HW,V) -> (V,N,B,HW) -> (V*N, M).
    # Pixels land on the lane axis, so all kernel matmuls/stores are lane-dense.
    feat_t = jnp.transpose(x, (3, 1, 0, 2)).reshape(V * N, M).astype(jnp.bfloat16)
    # Trailing ones row: lets every layer's bias ride the MXU as a folded
    # weight column (no in-kernel bias-broadcast/VALU passes).
    feat_t = jnp.concatenate([feat_t, jnp.ones((1, M), jnp.bfloat16)], axis=0)

    tm, Mpad = _choose_tile(M, tile_m)
    if Mpad != M:
        feat_t = jnp.pad(feat_t, ((0, 0), (0, Mpad - M)))

    w1a, w2a, w3a, w4a = _fold_params(params)
    out = _pallas_mlp_t(feat_t, w1a, w2a, w3a, w4a, tile_m=tm)   # (Mpad,)
    depth = out[:M].reshape(B, 1, H, W)                          # NCHW
    return depth


# Pure-JAX reference (same math & same bf16 quantization, no Pallas).
def esmnet_reference(params, x):
    B1, B2, N, H, W, V = x.shape
    x = x.reshape(B1 * B2, N, H * W, V)
    feat = jnp.transpose(x, (0, 2, 3, 1)).reshape(-1, V * N).astype(jnp.bfloat16)

    def bf(a):
        return a.astype(jnp.bfloat16)

    h = jnp.dot(feat, bf(params["w1"]), preferred_element_type=jnp.float32)
    h = jnp.maximum(h + bf(params["b1"]).astype(jnp.float32), 0.0)
    h = jnp.dot(bf(h), bf(params["w2"]), preferred_element_type=jnp.float32)
    h = jnp.maximum(h + bf(params["b2"]).astype(jnp.float32), 0.0)
    h = jnp.dot(bf(h), bf(params["w3"]), preferred_element_type=jnp.float32)
    h = jnp.maximum(h + bf(params["b3"]).astype(jnp.float32), 0.0)
    o = h @ params["w4"] + params["b4"]              # (M, 1) f32
    return o.reshape(B1 * B2, 1, H, W)


if __name__ == "__main__":
    # cfg-equivalent small dims
    input_dim, branch_dim, hidden_dim, feats_dim, n_views = 4, 8, 32, 16, 8

    key = jax.random.PRNGKey(0)
    kp, kx1, kx2 = jax.random.split(key, 3)
    params = init_params(kp, input_dim=input_dim, branch_dim=branch_dim,
                         hidden_dim=hidden_dim, feats_dim=feats_dim,
                         n_views=n_views)

    # Case 1: (B1, B2, N, H, W, V) = (2, 1, 4, 16, 16, 8) -> M = 512 pixels,
    # single tile / single grid step.
    x = jax.random.normal(kx1, (2, 1, input_dim, 16, 16, n_views), jnp.float32)
    out = esmnet_forward(params, x)
    jax.block_until_ready(out)
    ref = esmnet_reference(params, x)
    assert out.shape == (2, 1, 16, 16), out.shape
    assert jnp.allclose(out, ref, atol=5e-3, rtol=5e-3), \
        float(jnp.max(jnp.abs(out - ref)))

    # Case 2: ragged pixel count (M = 800, not a multiple of 128) to exercise
    # the zero-padded tail on a single tile.
    x2 = jax.random.normal(kx2, (1, 2, input_dim, 20, 20, n_views), jnp.float32)
    out2 = esmnet_forward(params, x2)
    jax.block_until_ready(out2)
    ref2 = esmnet_reference(params, x2)
    assert out2.shape == (2, 1, 20, 20), out2.shape
    assert jnp.allclose(out2, ref2, atol=5e-3, rtol=5e-3), \
        float(jnp.max(jnp.abs(out2 - ref2)))

    # Case 3: force the multi-step, even "parallel" grid path (tile override)
    # to exercise the cdiv grid + padded tail with G > 1.
    out3 = esmnet_forward(params, x2, tile_m=256)
    jax.block_until_ready(out3)
    assert out3.shape == (2, 1, 20, 20), out3.shape
    assert jnp.allclose(out3, ref2, atol=5e-3, rtol=5e-3), \
        float(jnp.max(jnp.abs(out3 - ref2)))

    print("KERNEL_OK")
</pallas_src>

<mosaic_0001>
module attributes {stable_mosaic.version = 11 : i64} {
  func.func @_esm_mlp_kernel(%arg0: i32, %arg1: memref<33x512xbf16, #tpu.memory_space<vmem>>, %arg2: memref<65x33xbf16, #tpu.memory_space<vmem>>, %arg3: memref<33x65xbf16, #tpu.memory_space<vmem>>, %arg4: memref<17x33xbf16, #tpu.memory_space<vmem>>, %arg5: memref<17x1xf32, #tpu.memory_space<vmem>>, %arg6: memref<1x1x512xf32, #tpu.memory_space<vmem>>) attributes {dimension_semantics = [#tpu.dimension_semantics<parallel>], iteration_bounds = array<i64: 1>, scalar_prefetch = 0 : i64, scratch_operands = 0 : i64, tpu.core_type = #tpu.core_type<tc>, window_params = [{transform_indices = @transform_0, window_bounds = array<i64: 33, 512>}, {pipeline_mode = #tpu.pipeline_mode<synchronous>, transform_indices = @transform_1, window_bounds = array<i64: 65, 33>}, {pipeline_mode = #tpu.pipeline_mode<synchronous>, transform_indices = @transform_2, window_bounds = array<i64: 33, 65>}, {pipeline_mode = #tpu.pipeline_mode<synchronous>, transform_indices = @transform_3, window_bounds = array<i64: 17, 33>}, {pipeline_mode = #tpu.pipeline_mode<synchronous>, transform_indices = @transform_4, window_bounds = array<i64: 17, 1>}, {transform_indices = @transform_5, window_bounds = array<i64: 1, 1, 512>}]} {
    %c0 = arith.constant 0 : index
    %c0_0 = arith.constant 0 : index
    %0 = vector.load %arg1[%c0, %c0_0] : memref<33x512xbf16, #tpu.memory_space<vmem>>, vector<33x512xbf16>
    %c0_1 = arith.constant 0 : index
    %c0_2 = arith.constant 0 : index
    %1 = vector.load %arg2[%c0_1, %c0_2] : memref<65x33xbf16, #tpu.memory_space<vmem>>, vector<65x33xbf16>
    %cst = arith.constant dense<0.000000e+00> : vector<65x512xf32>
    %2 = tpu.matmul %1, %0, %cst {dimension_numbers = #tpu.dot_dimension_numbers<[1], [0], [0], [1], [0, 0, 1, 1], [], []>} : vector<65x33xbf16>, vector<33x512xbf16>, vector<65x512xf32> -> vector<65x512xf32>
    %cst_3 = arith.constant 0.000000e+00 : f32
    %3 = vector.broadcast %cst_3 : f32 to vector<65x512xf32>
    %4 = arith.maximumf %2, %3 : vector<65x512xf32>
    %5 = arith.truncf %4 : vector<65x512xf32> to vector<65x512xbf16>
    %c0_4 = arith.constant 0 : index
    %c0_5 = arith.constant 0 : index
    %6 = vector.load %arg3[%c0_4, %c0_5] : memref<33x65xbf16, #tpu.memory_space<vmem>>, vector<33x65xbf16>
    %cst_6 = arith.constant dense<0.000000e+00> : vector<33x512xf32>
    %7 = tpu.matmul %6, %5, %cst_6 {dimension_numbers = #tpu.dot_dimension_numbers<[1], [0], [0], [1], [0, 0, 1, 1], [], []>} : vector<33x65xbf16>, vector<65x512xbf16>, vector<33x512xf32> -> vector<33x512xf32>
    %cst_7 = arith.constant 0.000000e+00 : f32
    %8 = vector.broadcast %cst_7 : f32 to vector<33x512xf32>
    %9 = arith.maximumf %7, %8 : vector<33x512xf32>
    %10 = arith.truncf %9 : vector<33x512xf32> to vector<33x512xbf16>
    %c0_8 = arith.constant 0 : index
    %c0_9 = arith.constant 0 : index
    %11 = vector.load %arg4[%c0_8, %c0_9] : memref<17x33xbf16, #tpu.memory_space<vmem>>, vector<17x33xbf16>
    %cst_10 = arith.constant dense<0.000000e+00> : vector<17x512xf32>
    %12 = tpu.matmul %11, %10, %cst_10 {dimension_numbers = #tpu.dot_dimension_numbers<[1], [0], [0], [1], [0, 0, 1, 1], [], []>} : vector<17x33xbf16>, vector<33x512xbf16>, vector<17x512xf32> -> vector<17x512xf32>
    %cst_11 = arith.constant 0.000000e+00 : f32
    %13 = vector.broadcast %cst_11 : f32 to vector<17x512xf32>
    %14 = arith.maximumf %12, %13 : vector<17x512xf32>
    %c0_12 = arith.constant 0 : index
    %c0_13 = arith.constant 0 : index
    %15 = vector.load %arg5[%c0_12, %c0_13] : memref<17x1xf32, #tpu.memory_space<vmem>>, vector<17x1xf32>
    %16 = vector.broadcast %15 : vector<17x1xf32> to vector<17x512xf32>
    %17 = arith.mulf %14, %16 : vector<17x512xf32>
    %cst_14 = arith.constant dense<0.000000e+00> : vector<512xf32>
    %18 = vector.multi_reduction <add>, %17, %cst_14 [0] : vector<17x512xf32> to vector<512xf32>
    %19 = vector.shape_cast %18 : vector<512xf32> to vector<1x512xf32>
    %c0_15 = arith.constant 0 : index
    %c0_16 = arith.constant 0 : index
    %c0_17 = arith.constant 0 : index
    %20 = vector.load %arg6[%c0_15, %c0_16, %c0_17] : memref<1x1x512xf32, #tpu.memory_space<vmem>>, vector<1x1x512xf32>
    %21 = vector.shape_cast %20 : vector<1x1x512xf32> to vector<1x512xf32>
    %22 = vector.shape_cast %19 : vector<1x512xf32> to vector<1x1x512xf32>
    tpu.vector_store %arg6[%c0_15, %c0_16, %c0_17], %22 {strides = array<i32>} : memref<1x1x512xf32, #tpu.memory_space<vmem>>, vector<1x1x512xf32>,
    return
  }
  func.func @transform_0(%arg0: i32) -> (i32, i32) {
    %c0_i32 = arith.constant 0 : i32
    %c0_i32_0 = arith.constant 0 : i32
    return %c0_i32, %arg0 : i32, i32
  }
  func.func @transform_1(%arg0: i32) -> (i32, i32) {
    %c0_i32 = arith.constant 0 : i32
    %c0_i32_0 = arith.constant 0 : i32
    %c0_i32_1 = arith.constant 0 : i32
    return %c0_i32, %c0_i32_0 : i32, i32
  }
  func.func @transform_2(%arg0: i32) -> (i32, i32) {
    %c0_i32 = arith.constant 0 : i32
    %c0_i32_0 = arith.constant 0 : i32
    %c0_i32_1 = arith.constant 0 : i32
    return %c0_i32, %c0_i32_0 : i32, i32
  }
  func.func @transform_3(%arg0: i32) -> (i32, i32) {
    %c0_i32 = arith.constant 0 : i32
    %c0_i32_0 = arith.constant 0 : i32
    %c0_i32_1 = arith.constant 0 : i32
    return %c0_i32, %c0_i32_0 : i32, i32
  }
  func.func @transform_4(%arg0: i32) -> (i32, i32) {
    %c0_i32 = arith.constant 0 : i32
    %c0_i32_0 = arith.constant 0 : i32
    %c0_i32_1 = arith.constant 0 : i32
    return %c0_i32, %c0_i32_0 : i32, i32
  }
  func.func @transform_5(%arg0: i32) -> (i32, i32, i32) {
    %c0_i32 = arith.constant 0 : i32
    %c0_i32_0 = arith.constant 0 : i32
    %c0_i32_1 = arith.constant 0 : i32
    return %arg0, %c0_i32, %c0_i32_0 : i32, i32, i32
  }
}

</mosaic_0001>

<llo_original>
// kernel: esmnet_forward.1
$region0: #{esmnet_forward.1}
  #allocation0 [shape = 'u32[]', space=smem, size = 0x4, offset = 0x4, fixed_abs, tag = 'smem constant byte address 0x4 - core index']
  #allocation1 [shape = 'u32[144,128]{1,0:T(1,128)}', space=vmem, size = 0x12000, scoped, tag = 'internal scratch']
  %s0 = inlined_call_operand.vmem [shape: bf16[33,512], index: 0, kind: input, shape index: {}]
  %s1 = inlined_call_operand.vmem [shape: bf16[65,33], index: 1, kind: input, shape index: {}]
  %s2 = inlined_call_operand.vmem [shape: bf16[33,65], index: 2, kind: input, shape index: {}]
  %s3 = inlined_call_operand.vmem [shape: bf16[17,33], index: 3, kind: input, shape index: {}]
  %s4 = inlined_call_operand.vmem [shape: f32[17,1], index: 4, kind: input, shape index: {}]
  %s5 = inlined_call_operand.vmem [shape: f32[1,1,512], index: 5, kind: output, shape index: {}]
  %s6 = sld [smem:[#allocation0]]
  $region30: #{esmnet_forward.1} parent=0
    _
  %s8 = ssub.s32 1, %s6
  %s9 = scalar_select 0, %s8, %s6
  // Predicated region
  $region2: #{esmnet_forward.1} parent=0 // pred_check
    _
  $region3: #{esmnet_forward.1} parent=0 // pred_check_branch
    %11 = sbr.rel (0) target = $region5
  $region4: #{esmnet_forward.1} parent=0 // pred_region
    _
  $region5: #{esmnet_forward.1} parent=0 // pred_fallthru
    _
  // Predicated region
  $region6: #{esmnet_forward.1} parent=0 // pred_check
    _
  $region7: #{esmnet_forward.1} parent=0 // pred_check_branch
    %13 = sbr.rel (0) target = $region9
  $region8: #{esmnet_forward.1} parent=0 // pred_region
    _
  $region9: #{esmnet_forward.1} parent=0 // pred_fallthru
    _
  // Predicated region
  $region10: #{esmnet_forward.1} parent=0 // pred_check
    _
  $region11: #{esmnet_forward.1} parent=0 // pred_check_branch
    %15 = sbr.rel (0) target = $region13
  $region12: #{esmnet_forward.1} parent=0 // pred_region
    _
  $region13: #{esmnet_forward.1} parent=0 // pred_fallthru
    _
  // Predicated region
  $region14: #{esmnet_forward.1} parent=0 // pred_check
    _
  $region15: #{esmnet_forward.1} parent=0 // pred_check_branch
    %17 = sbr.rel (0) target = $region17
  $region16: #{esmnet_forward.1} parent=0 // pred_region
    _
  $region17: #{esmnet_forward.1} parent=0 // pred_fallthru
    _
  // Predicated region
  $region18: #{esmnet_forward.1} parent=0 // pred_check
    _
  $region19: #{esmnet_forward.1} parent=0 // pred_check_branch
    %19 = sbr.rel (0) target = $region21
  $region20: #{esmnet_forward.1} parent=0 // pred_region
    _
  $region21: #{esmnet_forward.1} parent=0 // pred_fallthru
    _
  %v21 = vld [vmem:[%s0] sm:$0xff]
  %v22 = vld [vmem:[%s0 + $0x8] sm:$0xff]
  %v23 = vld [vmem:[%s0 + $0x10] sm:$0xff]
  %v24 = vld [vmem:[%s0 + $0x18] sm:$0xff]
  %v25 = vld [vmem:[%s0 + $0x20] sm:$0xff]
  %v26 = vld [vmem:[%s0 + $0x28] sm:$0xff]
  %v27 = vld [vmem:[%s0 + $0x30] sm:$0xff]
  %v28 = vld [vmem:[%s0 + $0x38] sm:$0xff]
  %v29 = vld [vmem:[%s0 + $0x40] sm:$0x11]
  %v30 = vld [vmem:[%s0 + $0x48] sm:$0x11]
  %v31 = vld [vmem:[%s1] sm:$0xf]
  %v32 = vld [vmem:[%s1 + $0x4] sm:$0xf]
  %v33 = vld [vmem:[%s1 + $0x8] sm:$0xf]
  %v34 = vld [vmem:[%s1 + $0xc] sm:$0xf]
  %v35 = vld [vmem:[%s1 + $0x10] sm:$0xf]
  %v36 = vld [vmem:[%s1 + $0x14] sm:$0xf]
  %v37 = vld [vmem:[%s1 + $0x18] sm:$0xf]
  %v38 = vld [vmem:[%s1 + $0x1c] sm:$0xf]
  %v39 = vld [vmem:[%s1 + $0x20] sm:$0x1]
  %v49 = vunpack.c.l.b16 %v31
  %v50 = vunpack.c.l.b16 %v32
  %v51 = vunpack.c.l.b16 %v33
  %v52 = vunpack.c.l.b16 %v34
  %v53 = vunpack.c.l.b16 %v35
  %v54 = vunpack.c.l.b16 %v36
  %v55 = vunpack.c.l.b16 %v37
  %v56 = vunpack.c.l.b16 %v38
  %v57 = vunpack.c.l.b16 %v39
  %v58 = vpack.c.b16 %v50, %v49
  %v59 = vpack.c.b16 %v52, %v51
  %v60 = vpack.c.b16 %v54, %v53
  %v61 = vpack.c.b16 %v56, %v55
  %v62 = vpack.c.b16 %v57, %v57
  %v73 = vunpack.c.l.b16 %v21
  %v74 = vunpack.c.h.b16 %v21
  %v75 = vunpack.c.l.b16 %v22
  %v76 = vunpack.c.h.b16 %v22
  %v77 = vunpack.c.l.b16 %v23
  %v78 = vunpack.c.h.b16 %v23
  %v79 = vunpack.c.l.b16 %v24
  %v80 = vunpack.c.h.b16 %v24
  %v81 = vunpack.c.l.b16 %v25
  %v82 = vunpack.c.h.b16 %v25
  %v83 = vunpack.c.l.b16 %v26
  %v84 = vunpack.c.h.b16 %v26
  %v85 = vunpack.c.l.b16 %v27
  %v86 = vunpack.c.h.b16 %v27
  %v87 = vunpack.c.l.b16 %v28
  %v88 = vunpack.c.h.b16 %v28
  %v89 = vunpack.c.l.b16 %v29
  %v90 = vunpack.c.h.b16 %v29
  %v91 = vunpack.c.l.b16 %v30
  %v92 = vunpack.c.h.b16 %v30
  %v93 = vpack.c.b16 %v77, %v73
  %v94 = vpack.c.b16 %v78, %v74
  %v95 = vpack.c.b16 %v79, %v75
  %v96 = vpack.c.b16 %v80, %v76
  %v97 = vpack.c.b16 %v85, %v81
  %v98 = vpack.c.b16 %v86, %v82
  %v99 = vpack.c.b16 %v87, %v83
  %v100 = vpack.c.b16 %v88, %v84
  %v101 = vpack.c.b16 %v89, %v89
  %v102 = vpack.c.b16 %v90, %v90
  %v103 = vpack.c.b16 %v91, %v91
  %v104 = vpack.c.b16 %v92, %v92
  %vm113 = vcmask 269312
  %v115 = vsel %vm113, %v58, 0
  %v118 = vsel %vm113, %v59, 0
  %v121 = vsel %vm113, %v60, 0
  %v124 = vsel %vm113, %v61, 0
  %v127 = vsel %vm113, %v62, 0
  %vm129 = vcmask 1040384
  %v130 = vsel 0, 4294967295, 65535
  %v131 = vsel %vm129, %v130, 0
  %v133 = vand.u32 %v101, %v131
  %v136 = vand.u32 %v102, %v131
  %v139 = vand.u32 %v103, %v131
  %v142 = vand.u32 %v104, %v131
  %144 = vmatprep.subr.bf16.mxu0 0
  %145 = vmatpush1.bf16.msra.mxu0 0
  %146 = vmatprep.subr.bf16.mxu0 0
  %147 = vmatpush1.bf16.msra.mxu0 0
  %148 = vmatprep.subr.bf16.mxu0 0
  %149 = vmatpush1.bf16.msra.mxu0 0
  %150 = vmatprep.subr.bf16.mxu0 0
  %151 = vmatpush1.bf16.msra.mxu0 0
  %152 = vmatprep.subr.bf16.mxu0 0
  %153 = vmatpush1.bf16.msra.mxu0 0
  %154 = vmatprep.subr.bf16.mxu0 %v136
  %155 = vmatpush1.bf16.msra.mxu0 %v133
  %156 = vmatprep.subr.bf16.mxu0 %v98
  %157 = vmatpush1.bf16.msra.mxu0 %v97
  %158 = vmatprep.subr.bf16.mxu0 %v94
  %159 = vmatpush1.bf16.msra.mxu0 %v93
  %160 = vmatprep.subr.bf16.mxu0 0
  %161 = vmatpush2.bf16.msra.mxu0 0
  %162 = vmatprep.subr.bf16.mxu0 0
  %163 = vmatpush2.bf16.msra.mxu0 0
  %164 = vmatprep.subr.bf16.mxu0 0
  %165 = vmatpush2.bf16.msra.mxu0 0
  %166 = vmatprep.subr.bf16.mxu0 0
  %167 = vmatpush2.bf16.msra.mxu0 0
  %168 = vmatprep.subr.bf16.mxu0 0
  %169 = vmatpush2.bf16.msra.mxu0 0
  %170 = vmatprep.subr.bf16.mxu0 0
  %171 = vmatpush2.bf16.msra.mxu0 0
  %172 = vmatprep.subr.bf16.mxu0 0
  %173 = vmatpush2.bf16.msra.mxu0 0
  %174 = vmatprep.subr.bf16.mxu0 0
  %175 = vmatpush2.bf16.msra.mxu0 0
  %176 = vmatprep.mubr.bf16.mxu0 0
  %177 = vmatmul.mubr.bf16.gmra.mxu0 %v115
  %v178 = vpop.f32.mrf.mxu0
  %v179 = vadd.f32 0.0, %v178
  %v180 = vpop.f32.mrf.mxu0
  %v181 = vadd.f32 0.0, %v180
  %v182 = vpop.f32.mrf.mxu0
  %v183 = vadd.f32 0.0, %v182
  %v184 = vpop.f32.mrf.mxu0
  %v185 = vadd.f32 0.0, %v184
  %186 = vmatprep.mubr.bf16.mxu0 0
  %187 = vmatmul.mubr.bf16.gmra.mxu0 %v118
  %v188 = vpop.f32.mrf.mxu0
  %v189 = vadd.f32 0.0, %v188
  %v190 = vpop.f32.mrf.mxu0
  %v191 = vadd.f32 0.0, %v190
  %v192 = vpop.f32.mrf.mxu0
  %v193 = vadd.f32 0.0, %v192
  %v194 = vpop.f32.mrf.mxu0
  %v195 = vadd.f32 0.0, %v194
  %196 = vmatprep.mubr.bf16.mxu0 0
  %197 = vmatmul.mubr.bf16.gmra.mxu0 %v121
  %v198 = vpop.f32.mrf.mxu0
  %v199 = vadd.f32 0.0, %v198
  %v200 = vpop.f32.mrf.mxu0
  %v201 = vadd.f32 0.0, %v200
  %v202 = vpop.f32.mrf.mxu0
  %v203 = vadd.f32 0.0, %v202
  %v204 = vpop.f32.mrf.mxu0
  %v205 = vadd.f32 0.0, %v204
  %206 = vmatprep.mubr.bf16.mxu0 0
  %207 = vmatmul.mubr.bf16.gmra.mxu0 %v124
  %v208 = vpop.f32.mrf.mxu0
  %v209 = vadd.f32 0.0, %v208
  %v210 = vpop.f32.mrf.mxu0
  %v211 = vadd.f32 0.0, %v210
  %v212 = vpop.f32.mrf.mxu0
  %v213 = vadd.f32 0.0, %v212
  %v214 = vpop.f32.mrf.mxu0
  %v215 = vadd.f32 0.0, %v214
  %216 = vmatprep.mubr.bf16.mxu0 0
  %217 = vmatmul.mubr.bf16.gmra.mxu0 %v127
  %v218 = vpop.f32.mrf.mxu0
  %v219 = vadd.f32 0.0, %v218
  %v220 = vpop.f32.mrf.mxu0
  %v221 = vadd.f32 0.0, %v220
  %v222 = vpop.f32.mrf.mxu0
  %v223 = vpop.f32.mrf.mxu0
  %224 = vdwg.mxu0
  %225 = vmatprep.subr.bf16.mxu0 0
  %226 = vmatpush1.bf16.msra.mxu0 0
  %227 = vmatprep.subr.bf16.mxu0 0
  %228 = vmatpush1.bf16.msra.mxu0 0
  %229 = vmatprep.subr.bf16.mxu0 0
  %230 = vmatpush1.bf16.msra.mxu0 0
  %231 = vmatprep.subr.bf16.mxu0 0
  %232 = vmatpush1.bf16.msra.mxu0 0
  %233 = vmatprep.subr.bf16.mxu0 0
  %234 = vmatpush1.bf16.msra.mxu0 0
  %235 = vmatprep.subr.bf16.mxu0 %v142
  %236 = vmatpush1.bf16.msra.mxu0 %v139
  %237 = vmatprep.subr.bf16.mxu0 %v100
  %238 = vmatpush1.bf16.msra.mxu0 %v99
  %239 = vmatprep.subr.bf16.mxu0 %v96
  %240 = vmatpush1.bf16.msra.mxu0 %v95
  %241 = vmatprep.subr.bf16.mxu0 0
  %242 = vmatpush2.bf16.msra.mxu0 0
  %243 = vmatprep.subr.bf16.mxu0 0
  %244 = vmatpush2.bf16.msra.mxu0 0
  %245 = vmatprep.subr.bf16.mxu0 0
  %246 = vmatpush2.bf16.msra.mxu0 0
  %247 = vmatprep.subr.bf16.mxu0 0
  %248 = vmatpush2.bf16.msra.mxu0 0
  %249 = vmatprep.subr.bf16.mxu0 0
  %250 = vmatpush2.bf16.msra.mxu0 0
  %251 = vmatprep.subr.bf16.mxu0 0
  %252 = vmatpush2.bf16.msra.mxu0 0
  %253 = vmatprep.subr.bf16.mxu0 0
  %254 = vmatpush2.bf16.msra.mxu0 0
  %255 = vmatprep.subr.bf16.mxu0 0
  %256 = vmatpush2.bf16.msra.mxu0 0
  %257 = vmatprep.mubr.bf16.mxu0 0
  %258 = vmatmul.mubr.bf16.gmra.mxu0 %v115
  %v259 = vpop.f32.mrf.mxu0
  %v260 = vadd.f32 0.0, %v259
  %v261 = vpop.f32.mrf.mxu0
  %v262 = vadd.f32 0.0, %v261
  %v263 = vpop.f32.mrf.mxu0
  %v264 = vadd.f32 0.0, %v263
  %v265 = vpop.f32.mrf.mxu0
  %v266 = vadd.f32 0.0, %v265
  %267 = vmatprep.mubr.bf16.mxu0 0
  %268 = vmatmul.mubr.bf16.gmra.mxu0 %v118
  %v269 = vpop.f32.mrf.mxu0
  %v270 = vadd.f32 0.0, %v269
  %v271 = vpop.f32.mrf.mxu0
  %v272 = vadd.f32 0.0, %v271
  %v273 = vpop.f32.mrf.mxu0
  %v274 = vadd.f32 0.0, %v273
  %v275 = vpop.f32.mrf.mxu0
  %v276 = vadd.f32 0.0, %v275
  %277 = vmatprep.mubr.bf16.mxu0 0
  %278 = vmatmul.mubr.bf16.gmra.mxu0 %v121
  %v279 = vpop.f32.mrf.mxu0
  %v280 = vadd.f32 0.0, %v279
  %v281 = vpop.f32.mrf.mxu0
  %v282 = vadd.f32 0.0, %v281
  %v283 = vpop.f32.mrf.mxu0
  %v284 = vadd.f32 0.0, %v283
  %v285 = vpop.f32.mrf.mxu0
  %v286 = vadd.f32 0.0, %v285
  %287 = vmatprep.mubr.bf16.mxu0 0
  %288 = vmatmul.mubr.bf16.gmra.mxu0 %v124
  %v289 = vpop.f32.mrf.mxu0
  %v290 = vadd.f32 0.0, %v289
  %v291 = vpop.f32.mrf.mxu0
  %v292 = vadd.f32 0.0, %v291
  %v293 = vpop.f32.mrf.mxu0
  %v294 = vadd.f32 0.0, %v293
  %v295 = vpop.f32.mrf.mxu0
  %v296 = vadd.f32 0.0, %v295
  %297 = vmatprep.mubr.bf16.mxu0 0
  %298 = vmatmul.mubr.bf16.gmra.mxu0 %v127
  %v299 = vpop.f32.mrf.mxu0
  %v300 = vadd.f32 0.0, %v299
  %v301 = vpop.f32.mrf.mxu0
  %v302 = vadd.f32 0.0, %v301
  %v303 = vpop.f32.mrf.mxu0
  %v304 = vpop.f32.mrf.mxu0
  %305 = vdwg.mxu0
  %v306 = vmax.f32 %v179, 0.0
  %v307 = vmax.f32 %v181, 0.0
  %v308 = vmax.f32 %v260, 0.0
  %v309 = vmax.f32 %v262, 0.0
  %v310 = vmax.f32 %v183, 0.0
  %v311 = vmax.f32 %v185, 0.0
  %v312 = vmax.f32 %v264, 0.0
  %v313 = vmax.f32 %v266, 0.0
  %v314 = vmax.f32 %v189, 0.0
  %v315 = vmax.f32 %v191, 0.0
  %v316 = vmax.f32 %v270, 0.0
  %v317 = vmax.f32 %v272, 0.0
  %v318 = vmax.f32 %v193, 0.0
  %v319 = vmax.f32 %v195, 0.0
  %v320 = vmax.f32 %v274, 0.0
  %v321 = vmax.f32 %v276, 0.0
  %v322 = vmax.f32 %v199, 0.0
  %v323 = vmax.f32 %v201, 0.0
  %v324 = vmax.f32 %v280, 0.0
  %v325 = vmax.f32 %v282, 0.0
  %v326 = vmax.f32 %v203, 0.0
  %v327 = vmax.f32 %v205, 0.0
  %v328 = vmax.f32 %v284, 0.0
  %v329 = vmax.f32 %v286, 0.0
  %v330 = vmax.f32 %v209, 0.0
  %v331 = vmax.f32 %v211, 0.0
  %v332 = vmax.f32 %v290, 0.0
  %v333 = vmax.f32 %v292, 0.0
  %v334 = vmax.f32 %v213, 0.0
  %v335 = vmax.f32 %v215, 0.0
  %v336 = vmax.f32 %v294, 0.0
  %v337 = vmax.f32 %v296, 0.0
  %v338 = vmax.f32 %v219, 0.0
  %v339 = vmax.f32 %v221, 0.0
  %v340 = vmax.f32 %v300, 0.0
  %v341 = vmax.f32 %v302, 0.0
  %v342 = vpack.c.bf16 %v310, %v306
  %v343 = vpack.c.bf16 %v311, %v307
  %v344 = vpack.c.bf16 %v312, %v308
  %v345 = vpack.c.bf16 %v313, %v309
  %v346 = vpack.c.bf16 %v318, %v314
  %v347 = vpack.c.bf16 %v319, %v315
  %v348 = vpack.c.bf16 %v320, %v316
  %v349 = vpack.c.bf16 %v321, %v317
  %v350 = vpack.c.bf16 %v326, %v322
  %v351 = vpack.c.bf16 %v327, %v323
  %v352 = vpack.c.bf16 %v328, %v324
  %v353 = vpack.c.bf16 %v329, %v325
  %v354 = vpack.c.bf16 %v334, %v330
  %v355 = vpack.c.bf16 %v335, %v331
  %v356 = vpack.c.bf16 %v336, %v332
  %v357 = vpack.c.bf16 %v337, %v333
  %v358 = vpack.c.bf16 %v338, %v338
  %v359 = vpack.c.bf16 %v339, %v339
  %v360 = vpack.c.bf16 %v340, %v340
  %v361 = vpack.c.bf16 %v341, %v341
  %v362 = vld [vmem:[%s2] sm:$0xf]
  %v363 = vld [vmem:[%s2 + $0x4] sm:$0xf]
  %v364 = vld [vmem:[%s2 + $0x8] sm:$0xf]
  %v365 = vld [vmem:[%s2 + $0xc] sm:$0xf]
  %v366 = vld [vmem:[%s2 + $0x10] sm:$0x1]
  %v372 = vunpack.c.l.b16 %v362
  %v373 = vunpack.c.l.b16 %v363
  %v374 = vunpack.c.l.b16 %v364
  %v375 = vunpack.c.l.b16 %v365
  %v376 = vunpack.c.l.b16 %v366
  %v377 = vpack.c.b16 %v373, %v372
  %v378 = vpack.c.b16 %v375, %v374
  %v379 = vpack.c.b16 %v376, %v376
  %vm380 = vcmask 531456
  %v382 = vsel %vm380, %v377, 0
  %v385 = vsel %vm380, %v378, 0
  %v388 = vsel %vm380, %v379, 0
  %v391 = vand.u32 %v358, %v131
  %v394 = vand.u32 %v359, %v131
  %v397 = vand.u32 %v360, %v131
  %v400 = vand.u32 %v361, %v131
  %402 = vmatprep.subr.bf16.mxu0 0
  %403 = vmatpush1.bf16.msra.mxu0 0
  %404 = vmatprep.subr.bf16.mxu0 0
  %405 = vmatpush1.bf16.msra.mxu0 0
  %406 = vmatprep.subr.bf16.mxu0 0
  %407 = vmatpush1.bf16.msra.mxu0 0
  %408 = vmatprep.subr.bf16.mxu0 %v394
  %409 = vmatpush1.bf16.msra.mxu0 %v391
  %410 = vmatprep.subr.bf16.mxu0 %v355
  %411 = vmatpush1.bf16.msra.mxu0 %v354
  %412 = vmatprep.subr.bf16.mxu0 %v351
  %413 = vmatpush1.bf16.msra.mxu0 %v350
  %414 = vmatprep.subr.bf16.mxu0 %v347
  %415 = vmatpush1.bf16.msra.mxu0 %v346
  %416 = vmatprep.subr.bf16.mxu0 %v343
  %417 = vmatpush1.bf16.msra.mxu0 %v342
  %418 = vmatprep.subr.bf16.mxu0 0
  %419 = vmatpush2.bf16.msra.mxu0 0
  %420 = vmatprep.subr.bf16.mxu0 0
  %421 = vmatpush2.bf16.msra.mxu0 0
  %422 = vmatprep.subr.bf16.mxu0 0
  %423 = vmatpush2.bf16.msra.mxu0 0
  %424 = vmatprep.subr.bf16.mxu0 0
  %425 = vmatpush2.bf16.msra.mxu0 0
  %426 = vmatprep.subr.bf16.mxu0 0
  %427 = vmatpush2.bf16.msra.mxu0 0
  %428 = vmatprep.subr.bf16.mxu0 0
  %429 = vmatpush2.bf16.msra.mxu0 0
  %430 = vmatprep.subr.bf16.mxu0 0
  %431 = vmatpush2.bf16.msra.mxu0 0
  %432 = vmatprep.subr.bf16.mxu0 0
  %433 = vmatpush2.bf16.msra.mxu0 0
  %434 = vmatprep.mubr.bf16.mxu0 0
  %435 = vmatmul.mubr.bf16.gmra.mxu0 %v382
  %v436 = vpop.f32.mrf.mxu0
  %v437 = vadd.f32 0.0, %v436
  %v438 = vpop.f32.mrf.mxu0
  %v439 = vadd.f32 0.0, %v438
  %v440 = vpop.f32.mrf.mxu0
  %v441 = vadd.f32 0.0, %v440
  %v442 = vpop.f32.mrf.mxu0
  %v443 = vadd.f32 0.0, %v442
  %444 = vmatprep.mubr.bf16.mxu0 0
  %445 = vmatmul.mubr.bf16.gmra.mxu0 %v385
  %v446 = vpop.f32.mrf.mxu0
  %v447 = vadd.f32 0.0, %v446
  %v448 = vpop.f32.mrf.mxu0
  %v449 = vadd.f32 0.0, %v448
  %v450 = vpop.f32.mrf.mxu0
  %v451 = vadd.f32 0.0, %v450
  %v452 = vpop.f32.mrf.mxu0
  %v453 = vadd.f32 0.0, %v452
  %454 = vmatprep.mubr.bf16.mxu0 0
  %455 = vmatmul.mubr.bf16.gmra.mxu0 %v388
  %v456 = vpop.f32.mrf.mxu0
  %v457 = vadd.f32 0.0, %v456
  %v458 = vpop.f32.mrf.mxu0
  %v459 = vadd.f32 0.0, %v458
  %v460 = vpop.f32.mrf.mxu0
  %v461 = vpop.f32.mrf.mxu0
  %462 = vdwg.mxu0
  %463 = vmatprep.subr.bf16.mxu0 0
  %464 = vmatpush1.bf16.msra.mxu0 0
  %465 = vmatprep.subr.bf16.mxu0 0
  %466 = vmatpush1.bf16.msra.mxu0 0
  %467 = vmatprep.subr.bf16.mxu0 0
  %468 = vmatpush1.bf16.msra.mxu0 0
  %469 = vmatprep.subr.bf16.mxu0 %v400
  %470 = vmatpush1.bf16.msra.mxu0 %v397
  %471 = vmatprep.subr.bf16.mxu0 %v357
  %472 = vmatpush1.bf16.msra.mxu0 %v356
  %473 = vmatprep.subr.bf16.mxu0 %v353
  %474 = vmatpush1.bf16.msra.mxu0 %v352
  %475 = vmatprep.subr.bf16.mxu0 %v349
  %476 = vmatpush1.bf16.msra.mxu0 %v348
  %477 = vmatprep.subr.bf16.mxu0 %v345
  %478 = vmatpush1.bf16.msra.mxu0 %v344
  %479 = vmatprep.subr.bf16.mxu0 0
  %480 = vmatpush2.bf16.msra.mxu0 0
  %481 = vmatprep.subr.bf16.mxu0 0
  %482 = vmatpush2.bf16.msra.mxu0 0
  %483 = vmatprep.subr.bf16.mxu0 0
  %484 = vmatpush2.bf16.msra.mxu0 0
  %485 = vmatprep.subr.bf16.mxu0 0
  %486 = vmatpush2.bf16.msra.mxu0 0
  %487 = vmatprep.subr.bf16.mxu0 0
  %488 = vmatpush2.bf16.msra.mxu0 0
  %489 = vmatprep.subr.bf16.mxu0 0
  %490 = vmatpush2.bf16.msra.mxu0 0
  %491 = vmatprep.subr.bf16.mxu0 0
  %492 = vmatpush2.bf16.msra.mxu0 0
  %493 = vmatprep.subr.bf16.mxu0 0
  %494 = vmatpush2.bf16.msra.mxu0 0
  %495 = vmatprep.mubr.bf16.mxu0 0
  %496 = vmatmul.mubr.bf16.gmra.mxu0 %v382
  %v497 = vpop.f32.mrf.mxu0
  %v498 = vadd.f32 0.0, %v497
  %v499 = vpop.f32.mrf.mxu0
  %v500 = vadd.f32 0.0, %v499
  %v501 = vpop.f32.mrf.mxu0
  %v502 = vadd.f32 0.0, %v501
  %v503 = vpop.f32.mrf.mxu0
  %v504 = vadd.f32 0.0, %v503
  %505 = vmatprep.mubr.bf16.mxu0 0
  %506 = vmatmul.mubr.bf16.gmra.mxu0 %v385
  %v507 = vpop.f32.mrf.mxu0
  %v508 = vadd.f32 0.0, %v507
  %v509 = vpop.f32.mrf.mxu0
  %v510 = vadd.f32 0.0, %v509
  %v511 = vpop.f32.mrf.mxu0
  %v512 = vadd.f32 0.0, %v511
  %v513 = vpop.f32.mrf.mxu0
  %v514 = vadd.f32 0.0, %v513
  %515 = vmatprep.mubr.bf16.mxu0 0
  %516 = vmatmul.mubr.bf16.gmra.mxu0 %v388
  %v517 = vpop.f32.mrf.mxu0
  %v518 = vadd.f32 0.0, %v517
  %v519 = vpop.f32.mrf.mxu0
  %v520 = vadd.f32 0.0, %v519
  %v521 = vpop.f32.mrf.mxu0
  %v522 = vpop.f32.mrf.mxu0
  %523 = vdwg.mxu0
  %v524 = vmax.f32 %v437, 0.0
  %v525 = vmax.f32 %v439, 0.0
  %v526 = vmax.f32 %v498, 0.0
  %v527 = vmax.f32 %v500, 0.0
  %v528 = vmax.f32 %v441, 0.0
  %v529 = vmax.f32 %v443, 0.0
  %v530 = vmax.f32 %v502, 0.0
  %v531 = vmax.f32 %v504, 0.0
  %v532 = vmax.f32 %v447, 0.0
  %v533 = vmax.f32 %v449, 0.0
  %v534 = vmax.f32 %v508, 0.0
  %v535 = vmax.f32 %v510, 0.0
  %v536 = vmax.f32 %v451, 0.0
  %v537 = vmax.f32 %v453, 0.0
  %v538 = vmax.f32 %v512, 0.0
  %v539 = vmax.f32 %v514, 0.0
  %v540 = vmax.f32 %v457, 0.0
  %v541 = vmax.f32 %v459, 0.0
  %v542 = vmax.f32 %v518, 0.0
  %v543 = vmax.f32 %v520, 0.0
  %v544 = vpack.c.bf16 %v528, %v524
  %v545 = vpack.c.bf16 %v529, %v525
  %v546 = vpack.c.bf16 %v530, %v526
  %v547 = vpack.c.bf16 %v531, %v527
  %v548 = vpack.c.bf16 %v536, %v532
  %v549 = vpack.c.bf16 %v537, %v533
  %v550 = vpack.c.bf16 %v538, %v534
  %v551 = vpack.c.bf16 %v539, %v535
  %v552 = vpack.c.bf16 %v540, %v540
  %v553 = vpack.c.bf16 %v541, %v541
  %v554 = vpack.c.bf16 %v542, %v542
  %v555 = vpack.c.bf16 %v543, %v543
  %v556 = vld [vmem:[%s3] sm:$0xf]
  %v557 = vld [vmem:[%s3 + $0x4] sm:$0xf]
  %v558 = vld [vmem:[%s3 + $0x8] sm:$0x1]
  %v562 = vunpack.c.l.b16 %v556
  %v563 = vunpack.c.l.b16 %v557
  %v564 = vunpack.c.l.b16 %v558
  %v565 = vpack.c.b16 %v563, %v562
  %v566 = vpack.c.b16 %v564, %v564
  %v568 = vsel %vm113, %v565, 0
  %v571 = vsel %vm113, %v566, 0
  %v574 = vand.u32 %v552, %v131
  %v577 = vand.u32 %v553, %v131
  %v580 = vand.u32 %v554, %v131
  %v583 = vand.u32 %v555, %v131
  %585 = vmatprep.subr.bf16.mxu0 0
  %586 = vmatpush1.bf16.msra.mxu0 0
  %587 = vmatprep.subr.bf16.mxu0 0
  %588 = vmatpush1.bf16.msra.mxu0 0
  %589 = vmatprep.subr.bf16.mxu0 0
  %590 = vmatpush1.bf16.msra.mxu0 0
  %591 = vmatprep.subr.bf16.mxu0 0
  %592 = vmatpush1.bf16.msra.mxu0 0
  %593 = vmatprep.subr.bf16.mxu0 0
  %594 = vmatpush1.bf16.msra.mxu0 0
  %595 = vmatprep.subr.bf16.mxu0 %v577
  %596 = vmatpush1.bf16.msra.mxu0 %v574
  %597 = vmatprep.subr.bf16.mxu0 %v549
  %598 = vmatpush1.bf16.msra.mxu0 %v548
  %599 = vmatprep.subr.bf16.mxu0 %v545
  %600 = vmatpush1.bf16.msra.mxu0 %v544
  %601 = vmatprep.subr.bf16.mxu0 0
  %602 = vmatpush2.bf16.msra.mxu0 0
  %603 = vmatprep.subr.bf16.mxu0 0
  %604 = vmatpush2.bf16.msra.mxu0 0
  %605 = vmatprep.subr.bf16.mxu0 0
  %606 = vmatpush2.bf16.msra.mxu0 0
  %607 = vmatprep.subr.bf16.mxu0 0
  %608 = vmatpush2.bf16.msra.mxu0 0
  %609 = vmatprep.subr.bf16.mxu0 0
  %610 = vmatpush2.bf16.msra.mxu0 0
  %611 = vmatprep.subr.bf16.mxu0 0
  %612 = vmatpush2.bf16.msra.mxu0 0
  %613 = vmatprep.subr.bf16.mxu0 0
  %614 = vmatpush2.bf16.msra.mxu0 0
  %615 = vmatprep.subr.bf16.mxu0 0
  %616 = vmatpush2.bf16.msra.mxu0 0
  %617 = vmatprep.mubr.bf16.mxu0 0
  %618 = vmatmul.mubr.bf16.gmra.mxu0 %v568
  %v619 = vpop.f32.mrf.mxu0
  %v620 = vadd.f32 0.0, %v619
  %v621 = vpop.f32.mrf.mxu0
  %v622 = vadd.f32 0.0, %v621
  %v623 = vpop.f32.mrf.mxu0
  %v624 = vadd.f32 0.0, %v623
  %v625 = vpop.f32.mrf.mxu0
  %v626 = vadd.f32 0.0, %v625
  %627 = vmatprep.mubr.bf16.mxu0 0
  %628 = vmatmul.mubr.bf16.gmra.mxu0 %v571
  %v629 = vpop.f32.mrf.mxu0
  %v630 = vadd.f32 0.0, %v629
  %v631 = vpop.f32.mrf.mxu0
  %v632 = vadd.f32 0.0, %v631
  %v633 = vpop.f32.mrf.mxu0
  %v634 = vpop.f32.mrf.mxu0
  %635 = vdwg.mxu0
  %636 = vmatprep.subr.bf16.mxu0 0
  %637 = vmatpush1.bf16.msra.mxu0 0
  %638 = vmatprep.subr.bf16.mxu0 0
  %639 = vmatpush1.bf16.msra.mxu0 0
  %640 = vmatprep.subr.bf16.mxu0 0
  %641 = vmatpush1.bf16.msra.mxu0 0
  %642 = vmatprep.subr.bf16.mxu0 0
  %643 = vmatpush1.bf16.msra.mxu0 0
  %644 = vmatprep.subr.bf16.mxu0 0
  %645 = vmatpush1.bf16.msra.mxu0 0
  %646 = vmatprep.subr.bf16.mxu0 %v583
  %647 = vmatpush1.bf16.msra.mxu0 %v580
  %648 = vmatprep.subr.bf16.mxu0 %v551
  %649 = vmatpush1.bf16.msra.mxu0 %v550
  %650 = vmatprep.subr.bf16.mxu0 %v547
  %651 = vmatpush1.bf16.msra.mxu0 %v546
  %652 = vmatprep.subr.bf16.mxu0 0
  %653 = vmatpush2.bf16.msra.mxu0 0
  %654 = vmatprep.subr.bf16.mxu0 0
  %655 = vmatpush2.bf16.msra.mxu0 0
  %656 = vmatprep.subr.bf16.mxu0 0
  %657 = vmatpush2.bf16.msra.mxu0 0
  %658 = vmatprep.subr.bf16.mxu0 0
  %659 = vmatpush2.bf16.msra.mxu0 0
  %660 = vmatprep.subr.bf16.mxu0 0
  %661 = vmatpush2.bf16.msra.mxu0 0
  %662 = vmatprep.subr.bf16.mxu0 0
  %663 = vmatpush2.bf16.msra.mxu0 0
  %664 = vmatprep.subr.bf16.mxu0 0
  %665 = vmatpush2.bf16.msra.mxu0 0
  %666 = vmatprep.subr.bf16.mxu0 0
  %667 = vmatpush2.bf16.msra.mxu0 0
  %668 = vmatprep.mubr.bf16.mxu0 0
  %669 = vmatmul.mubr.bf16.gmra.mxu0 %v568
  %v670 = vpop.f32.mrf.mxu0
  %v671 = vadd.f32 0.0, %v670
  %v672 = vpop.f32.mrf.mxu0
  %v673 = vadd.f32 0.0, %v672
  %v674 = vpop.f32.mrf.mxu0
  %v675 = vadd.f32 0.0, %v674
  %v676 = vpop.f32.mrf.mxu0
  %v677 = vadd.f32 0.0, %v676
  %678 = vmatprep.mubr.bf16.mxu0 0
  %679 = vmatmul.mubr.bf16.gmra.mxu0 %v571
  %v680 = vpop.f32.mrf.mxu0
  %v681 = vadd.f32 0.0, %v680
  %v682 = vpop.f32.mrf.mxu0
  %v683 = vadd.f32 0.0, %v682
  %v684 = vpop.f32.mrf.mxu0
  %v685 = vpop.f32.mrf.mxu0
  %686 = vdwg.mxu0
  %v687 = vmax.f32 %v620, 0.0
  %v688 = vmax.f32 %v622, 0.0
  %v689 = vmax.f32 %v671, 0.0
  %v690 = vmax.f32 %v673, 0.0
  %v691 = vmax.f32 %v624, 0.0
  %v692 = vmax.f32 %v626, 0.0
  %v693 = vmax.f32 %v675, 0.0
  %v694 = vmax.f32 %v677, 0.0
  %v695 = vmax.f32 %v630, 0.0
  %v696 = vmax.f32 %v632, 0.0
  %v697 = vmax.f32 %v681, 0.0
  %v698 = vmax.f32 %v683, 0.0
  %v699 = vld [vmem:[%s4] sm:$0xff]
  %v700 = vld [vmem:[%s4 + $0x8] sm:$0xff]
  %v701 = vld [vmem:[%s4 + $0x10] sm:$0x1]
  %703 = vset.pattern.permute.xlu0 0
  %704 = vperm.xlu0 %703, %v699
  %v705 = vpop.permute.xlu0 %704
  %708 = vset.pattern.permute.xlu0 0
  %709 = vperm.xlu0 %708, %v700
  %v710 = vpop.permute.xlu0 %709
  %713 = vset.pattern.permute.xlu0 0
  %714 = vperm.xlu0 %713, %v701
  %v715 = vpop.permute.xlu0 %714
  %v717 = vmul.f32 %v687, %v705
  %v718 = vmul.f32 %v688, %v705
  %v719 = vmul.f32 %v689, %v705
  %v720 = vmul.f32 %v690, %v705
  %v721 = vmul.f32 %v691, %v710
  %v722 = vmul.f32 %v692, %v710
  %v723 = vmul.f32 %v693, %v710
  %v724 = vmul.f32 %v694, %v710
  %v725 = vmul.f32 %v695, %v715
  %v726 = vmul.f32 %v696, %v715
  %v727 = vmul.f32 %v697, %v715
  %v728 = vmul.f32 %v698, %v715
  %v729 = vadd.f32 %v717, %v721
  %v730 = vsel %vm129, %v725, 0.0
  %v731 = vadd.f32 %v729, %v730
  %v732 = vrot.slane %v731, 4
  %v733 = vadd.f32 %v731, %v732
  %v734 = vrot.slane %v733, 2
  %v735 = vadd.f32 %v733, %v734
  %v736 = vrot.slane %v735, 1
  %v737 = vadd.f32 %v735, %v736
  %v738 = vadd.f32 %v718, %v722
  %v739 = vsel %vm129, %v726, 0.0
  %v740 = vadd.f32 %v738, %v739
  %v741 = vrot.slane %v740, 4
  %v742 = vadd.f32 %v740, %v741
  %v743 = vrot.slane %v742, 2
  %v744 = vadd.f32 %v742, %v743
  %v745 = vrot.slane %v744, 1
  %v746 = vadd.f32 %v744, %v745
  %v747 = vadd.f32 %v719, %v723
  %v748 = vsel %vm129, %v727, 0.0
  %v749 = vadd.f32 %v747, %v748
  %v750 = vrot.slane %v749, 4
  %v751 = vadd.f32 %v749, %v750
  %v752 = vrot.slane %v751, 2
  %v753 = vadd.f32 %v751, %v752
  %v754 = vrot.slane %v753, 1
  %v755 = vadd.f32 %v753, %v754
  %v756 = vadd.f32 %v720, %v724
  %v757 = vsel %vm129, %v728, 0.0
  %v758 = vadd.f32 %v756, %v757
  %v759 = vrot.slane %v758, 4
  %v760 = vadd.f32 %v758, %v759
  %v761 = vrot.slane %v760, 2
  %v762 = vadd.f32 %v760, %v761
  %v763 = vrot.slane %v762, 1
  %v764 = vadd.f32 %v762, %v763
  %v769 = vcombine.low %v737, %v746
  %v770 = vcombine.low %v755, %v764
  %v772 = vunpack.c.l.s4 1966171168
  %v773 = vunpack.c.0.s8 %v772
  %v774 = vlaneseq
  %v775 = vshrl.u32 %v774, 7
  %v776 = vsub.s32 %v773, %v775
  %v777 = vrot.slane %v769, %v776
  %v779 = vunpack.c.l.s4 1966171168
  %v780 = vunpack.c.0.s8 %v779
  %v781 = vlaneseq
  %v782 = vshrl.u32 %v781, 7
  %v783 = vsub.s32 %v780, %v782
  %v784 = vrot.slane %v770, %v783
  %v785 = vcombine.low %v777, %v784
  %v787 = vunpack.c.l.s4 1966171168
  %v788 = vunpack.c.0.s8 %v787
  %v789 = vlaneseq
  %v790 = vshrl.u32 %v789, 7
  %v791 = vsub.s32 %v788, %v790
  %v792 = vrot.slane %v785, %v791
  %v794 = vlaneseq
  %vm795 = vcmp.ge.s32.totalorder %v794, 0
  %vm796 = vcmp.lt.s32.totalorder %v794, 512
  %vm797 = vmand %vm795, %vm796
  %798 = vst.msk [vmem:[%s5] sm:$0xf] %vm797, %v792
  // Predicated region
  $region22: #{esmnet_forward.1} parent=0 // pred_check
    _
  $region23: #{esmnet_forward.1} parent=0 // pred_check_branch
    %800 = sbr.rel (0) target = $region25
  $region24: #{esmnet_forward.1} parent=0 // pred_region
    _
  $region25: #{esmnet_forward.1} parent=0 // pred_fallthru
    _
  // Predicated region
  $region26: #{esmnet_forward.1} parent=0 // pred_check
    _
  $region27: #{esmnet_forward.1} parent=0 // pred_check_branch
    %802 = sbr.rel (0) target = $region29
  $region28: #{esmnet_forward.1} parent=0 // pred_region
    _
  $region29: #{esmnet_forward.1} parent=0 // pred_fallthru
    _

</llo_original>
